<compile_context>
chip_gen: v5e
topology: v5e:2x2
jax: 0.10.0
libtpu: 0.0.40
codegen_flags: <defaults>
</compile_context>

<pallas_src>
import functools

import jax
import jax.numpy as jnp
from jax.experimental import pallas as pl
from jax.experimental.pallas import tpu as pltpu


# ----------------------------- Pallas kernel ------------------------------- #

def _segment_matrix(n_seg, seg_len, seg_axis, value):
    """Constant selection matrix: entry = `value` iff flat index j lies in segment s.

    seg_axis == 0 -> shape (n_seg, n_seg*seg_len)   (used to broadcast gate -> lanes)
    seg_axis == 1 -> shape (n_seg*seg_len, n_seg)   (used for per-channel mean)
    Built from 2-D iotas + compares only (no integer division), so it lowers
    cleanly for any seg_len.
    """
    if seg_axis == 0:
        shape = (n_seg, n_seg * seg_len)
        s = jax.lax.broadcasted_iota(jnp.int32, shape, 0)
        j = jax.lax.broadcasted_iota(jnp.int32, shape, 1)
    else:
        shape = (n_seg * seg_len, n_seg)
        s = jax.lax.broadcasted_iota(jnp.int32, shape, 1)
        j = jax.lax.broadcasted_iota(jnp.int32, shape, 0)
    lo = s * seg_len
    sel = (j >= lo) & (j < lo + seg_len)
    return jnp.where(sel, value, 0.0).astype(jnp.float32)


def _se_fused_kernel(ft_ref, fs_ref, w_ref, out_s_ref, out_t_ref, *, C, Cr, HWT, HWS):
    """Fused SE gate + scale for a block of TB batch rows.

      ft_ref  : (TB, C*HWT) teacher features (channel-major flat), lane-dense
      fs_ref  : (TB, C*HWS) student features
      w_ref   : (2*Cr, C)   rows [0:Cr] = fc1.weight, rows [Cr:2Cr] = fc2.weight.T
      out_s/t : (TB, C*HWS) / (TB, C*HWT) scaled outputs, lane-dense stores
    """
    ft = ft_ref[...].astype(jnp.float32)          # (TB, C*HWT)
    fs = fs_ref[...].astype(jnp.float32)          # (TB, C*HWS)
    w = w_ref[...].astype(jnp.float32)            # (2*Cr, C)
    w1 = w[:Cr, :]                                # fc1.weight   (Cr, C)
    w2t = w[Cr:, :]                               # fc2.weight.T (Cr, C)

    # ---- per-channel global average pool of the teacher (MXU segmented mean) --
    # pool_mat has exactly HWT entries of 1/HWT per output channel -> exact mean.
    pool_mat = _segment_matrix(C, HWT, seg_axis=1, value=1.0 / HWT)       # (C*HWT, C)
    pooled = jnp.dot(ft, pool_mat, preferred_element_type=jnp.float32)    # (TB, C)

    # ---- tiny FC gate C -> Cr -> C, kept on the VPU/XLU (unrolled over Cr) ----
    logits = jnp.zeros_like(pooled)                                       # (TB, C)
    for r in range(Cr):
        h_r = jnp.sum(pooled * w1[r:r + 1, :], axis=-1, keepdims=True)    # (TB, 1)
        h_r = jnp.maximum(h_r, 0.0)                                       # ReLU
        logits = logits + h_r * w2t[r:r + 1, :]                           # (TB, C)
    y = 1.0 / (1.0 + jnp.exp(-logits))                                    # Sigmoid (EUP)

    # ---- broadcast gate across each channel's HW lanes (0/1 MXU matmul) -------
    # Exactly one nonzero per output lane -> exact replication, no relayout.
    bcast_t = _segment_matrix(C, HWT, seg_axis=0, value=1.0)              # (C, C*HWT)
    y_t = jnp.dot(y, bcast_t, preferred_element_type=jnp.float32)         # (TB, C*HWT)
    if HWS == HWT:
        y_s = y_t
    else:
        bcast_s = _segment_matrix(C, HWS, seg_axis=0, value=1.0)          # (C, C*HWS)
        y_s = jnp.dot(y, bcast_s, preferred_element_type=jnp.float32)     # (TB, C*HWS)

    # ---- lane-dense scaled stores --------------------------------------------
    out_t_ref[...] = (ft * y_t).astype(out_t_ref.dtype)
    out_s_ref[...] = (fs * y_s).astype(out_s_ref.dtype)


# ------------------------------- wrappers ---------------------------------- #

def adaptive_avg_pool2d(x, out_hw):
    """Matches nn.AdaptiveAvgPool2d when input spatial dims divide output dims."""
    b, c, h, w = x.shape
    oh, ow = out_hw
    assert h % oh == 0 and w % ow == 0, "only divisible adaptive pooling supported"
    # TODO(synk): general non-divisible AdaptiveAvgPool2d bin edges not implemented.
    return x.reshape(b, c, oh, h // oh, ow, w // ow).mean(axis=(3, 5))


def _pick_batch_tile(B):
    """Batch rows per grid step.

    Keeps the (TB, C*HW) block's sublane dim a multiple of 8 (or the full batch
    for tiny B) and, when B >= 16, leaves >= 2 grid steps so the "parallel"
    grid axis can be sharded across both v7x TensorCores.  Capped at 128 rows
    (~1 MiB of double-buffered VMEM at these feature sizes).
    """
    if B < 16:
        return B
    tb = min(128, B // 2)
    tb -= tb % 8
    return max(8, tb)


def selayer_single_forward(x_S, x_T, w1, w2):
    """SELayer_Single forward.

    x_S, x_T : lists of NCHW feature maps (same batch, per-level channels).
    w1       : fc1.weight, shape (C // reduction, C)   (torch layout)
    w2       : fc2.weight, shape (C, C // reduction)   (torch layout)
    Returns (feat_S * y, feat_T * y) with feats concatenated along channels,
    y = sigmoid(fc2(relu(fc1(gap(feat_T))))) computed from the teacher only.
    """
    n = len(x_T)
    assert n == len(x_S) and n >= 1
    B = int(x_T[0].shape[0])
    _, _, h_t, w_t = x_T[-1].shape
    _, _, h_s, w_s = x_S[-1].shape
    HWT, HWS = h_t * w_t, h_s * w_s

    # Adaptive pools (tiny strided reductions) and the ~8 KB concat stay in XLA;
    # everything else is one Pallas launch.
    feats_T = [adaptive_avg_pool2d(x_T[i], (h_t, w_t)) for i in range(n - 1)] + [x_T[-1]]
    feats_S = [adaptive_avg_pool2d(x_S[i], (h_s, w_s)) for i in range(n - 1)] + [x_S[-1]]
    C = sum(int(f.shape[1]) for f in feats_T)
    Cr = int(w1.shape[0])
    assert int(w1.shape[1]) == C and tuple(w2.shape) == (C, Cr)

    # Per-level flatten + concat along the flat axis is row-major identical to
    # channel-concat followed by flatten, so no extra relayout is introduced.
    fT = jnp.concatenate([f.reshape(B, -1) for f in feats_T], axis=1)   # (B, C*HWT)
    fS = jnp.concatenate([f.reshape(B, -1) for f in feats_S], axis=1)   # (B, C*HWS)

    # One tiny packed weight ref: fc1.weight stacked over fc2.weight.T -> (2*Cr, C).
    w_packed = jnp.concatenate([w1, jnp.transpose(w2)], axis=0).astype(jnp.float32)

    TB = _pick_batch_tile(B)
    grid = (pl.cdiv(B, TB),)

    kernel = functools.partial(_se_fused_kernel, C=C, Cr=Cr, HWT=HWT, HWS=HWS)

    out_S_flat, out_T_flat = pl.pallas_call(
        kernel,
        out_shape=[
            jax.ShapeDtypeStruct((B, C * HWS), fS.dtype),
            jax.ShapeDtypeStruct((B, C * HWT), fT.dtype),
        ],
        grid=grid,
        in_specs=[
            pl.BlockSpec((TB, C * HWT), lambda b: (b, 0)),   # teacher slab
            pl.BlockSpec((TB, C * HWS), lambda b: (b, 0)),   # student slab
            pl.BlockSpec((2 * Cr, C), lambda b: (0, 0)),     # packed weights (grid-invariant)
        ],
        out_specs=[
            pl.BlockSpec((TB, C * HWS), lambda b: (b, 0)),
            pl.BlockSpec((TB, C * HWT), lambda b: (b, 0)),
        ],
        compiler_params=pltpu.CompilerParams(
            dimension_semantics=("parallel",),               # shard batch blocks across TCs
        ),
    )(fT, fS, w_packed)

    # Free row-major reshapes back to NCHW.
    return out_S_flat.reshape(B, C, h_s, w_s), out_T_flat.reshape(B, C, h_t, w_t)


# -------------------------- pure-JAX reference ------------------------------ #

def _reference(x_S, x_T, w1, w2):
    f3_T = x_T[3]
    _, _, h, w = f3_T.shape
    feats_T = [adaptive_avg_pool2d(x_T[i], (h, w)) for i in range(3)] + [f3_T]
    f3_S = x_S[3]
    _, _, hs, ws = f3_S.shape
    feats_S = [adaptive_avg_pool2d(x_S[i], (hs, ws)) for i in range(3)] + [f3_S]
    feat_T = jnp.concatenate(feats_T, axis=1)
    feat_S = jnp.concatenate(feats_S, axis=1)
    pooled = feat_T.mean(axis=(2, 3))                           # (B, C)
    y = jax.nn.sigmoid(jnp.maximum(pooled @ w1.T, 0.0) @ w2.T)  # torch Linear layout
    y = y[:, :, None, None]
    return feat_S * y, feat_T * y


# ---------------------------------- main ------------------------------------ #

if __name__ == "__main__":
    key = jax.random.PRNGKey(0)
    ks = jax.random.split(key, 10)

    B = 2
    # Per-level channels sum to channel=32; reduction=16 -> hidden=2.
    x_T = [
        jax.random.normal(ks[0], (B, 8, 16, 16), jnp.float32),
        jax.random.normal(ks[1], (B, 8, 8, 8), jnp.float32),
        jax.random.normal(ks[2], (B, 8, 8, 8), jnp.float32),
        jax.random.normal(ks[3], (B, 8, 4, 4), jnp.float32),
    ]
    x_S = [
        jax.random.normal(ks[4], (B, 8, 16, 16), jnp.float32),
        jax.random.normal(ks[5], (B, 8, 8, 8), jnp.float32),
        jax.random.normal(ks[6], (B, 8, 8, 8), jnp.float32),
        jax.random.normal(ks[7], (B, 8, 4, 4), jnp.float32),
    ]

    channel = 32
    reduction = 16
    hidden = channel // reduction
    # Weights in the torch nn.Linear layout: weight shape = (out_features, in_features).
    w1 = 0.1 * jax.random.normal(ks[8], (hidden, channel), jnp.float32)   # fc1.weight
    w2 = 0.1 * jax.random.normal(ks[9], (channel, hidden), jnp.float32)   # fc2.weight

    out_S, out_T = selayer_single_forward(x_S, x_T, w1, w2)
    jax.block_until_ready((out_S, out_T))

    ref_S, ref_T = _reference(x_S, x_T, w1, w2)
    assert out_S.shape == ref_S.shape and out_T.shape == ref_T.shape
    assert jnp.allclose(out_S, ref_S, atol=1e-5, rtol=1e-5)
    assert jnp.allclose(out_T, ref_T, atol=1e-5, rtol=1e-5)

    print("KERNEL_OK")
</pallas_src>

<mosaic_0001>
module attributes {stable_mosaic.version = 11 : i64} {
  func.func @_se_fused_kernel(%arg0: i32, %arg1: memref<2x512xf32, #tpu.memory_space<vmem>>, %arg2: memref<2x512xf32, #tpu.memory_space<vmem>>, %arg3: memref<4x32xf32, #tpu.memory_space<vmem>>, %arg4: memref<2x512xf32, #tpu.memory_space<vmem>>, %arg5: memref<2x512xf32, #tpu.memory_space<vmem>>) attributes {dimension_semantics = [#tpu.dimension_semantics<parallel>], iteration_bounds = array<i64: 1>, scalar_prefetch = 0 : i64, scratch_operands = 0 : i64, tpu.core_type = #tpu.core_type<tc>, window_params = [{transform_indices = @transform_0, window_bounds = array<i64: 2, 512>}, {transform_indices = @transform_1, window_bounds = array<i64: 2, 512>}, {pipeline_mode = #tpu.pipeline_mode<synchronous>, transform_indices = @transform_2, window_bounds = array<i64: 4, 32>}, {transform_indices = @transform_3, window_bounds = array<i64: 2, 512>}, {transform_indices = @transform_4, window_bounds = array<i64: 2, 512>}]} {
    %c0 = arith.constant 0 : index
    %c0_0 = arith.constant 0 : index
    %0 = vector.load %arg1[%c0, %c0_0] : memref<2x512xf32, #tpu.memory_space<vmem>>, vector<2x512xf32>
    %c0_1 = arith.constant 0 : index
    %c0_2 = arith.constant 0 : index
    %1 = vector.load %arg2[%c0_1, %c0_2] : memref<2x512xf32, #tpu.memory_space<vmem>>, vector<2x512xf32>
    %c0_3 = arith.constant 0 : index
    %c0_4 = arith.constant 0 : index
    %2 = vector.load %arg3[%c0_3, %c0_4] : memref<4x32xf32, #tpu.memory_space<vmem>>, vector<4x32xf32>
    %3 = vector.extract_strided_slice %2 {offsets = [0, 0], sizes = [2, 32], strides = [1, 1]} : vector<4x32xf32> to vector<2x32xf32>
    %4 = vector.extract_strided_slice %2 {offsets = [2, 0], sizes = [2, 32], strides = [1, 1]} : vector<4x32xf32> to vector<2x32xf32>
    %5 = tpu.iota {dimensions = array<i32: 1>} : vector<512x32xi32>
    %6 = tpu.iota {dimensions = array<i32: 0>} : vector<512x32xi32>
    %c16_i32 = arith.constant 16 : i32
    %7 = vector.broadcast %c16_i32 : i32 to vector<512x32xi32>
    %8 = arith.muli %5, %7 : vector<512x32xi32>
    %9 = arith.cmpi sge, %6, %8 : vector<512x32xi32>
    %c16_i32_5 = arith.constant 16 : i32
    %10 = vector.broadcast %c16_i32_5 : i32 to vector<512x32xi32>
    %11 = arith.addi %8, %10 : vector<512x32xi32>
    %12 = arith.cmpi slt, %6, %11 : vector<512x32xi32>
    %13 = arith.andi %9, %12 : vector<512x32xi1>
    %cst = arith.constant 6.250000e-02 : f32
    %cst_6 = arith.constant 0.000000e+00 : f32
    %14 = vector.broadcast %cst : f32 to vector<512x32xf32>
    %15 = vector.broadcast %cst_6 : f32 to vector<512x32xf32>
    %16 = arith.select %13, %14, %15 : vector<512x32xi1>, vector<512x32xf32>
    %cst_7 = arith.constant dense<0.000000e+00> : vector<2x32xf32>
    %17 = tpu.matmul %0, %16, %cst_7 {dimension_numbers = #tpu.dot_dimension_numbers<[1], [0], [0], [1], [0, 0, 1, 1], [], []>} : vector<2x512xf32>, vector<512x32xf32>, vector<2x32xf32> -> vector<2x32xf32>
    %cst_8 = arith.constant 0.000000e+00 : f32
    %18 = vector.broadcast %cst_8 : f32 to vector<2x32xf32>
    %19 = vector.extract_strided_slice %3 {offsets = [0, 0], sizes = [1, 32], strides = [1, 1]} : vector<2x32xf32> to vector<1x32xf32>
    %20 = vector.broadcast %19 : vector<1x32xf32> to vector<2x32xf32>
    %21 = arith.mulf %17, %20 : vector<2x32xf32>
    %cst_9 = arith.constant dense<0.000000e+00> : vector<2xf32>
    %22 = vector.multi_reduction <add>, %21, %cst_9 [1] : vector<2x32xf32> to vector<2xf32>
    %23 = vector.shape_cast %22 : vector<2xf32> to vector<2x1xf32>
    %cst_10 = arith.constant 0.000000e+00 : f32
    %24 = vector.broadcast %cst_10 : f32 to vector<2x1xf32>
    %25 = arith.maximumf %23, %24 : vector<2x1xf32>
    %26 = vector.extract_strided_slice %4 {offsets = [0, 0], sizes = [1, 32], strides = [1, 1]} : vector<2x32xf32> to vector<1x32xf32>
    %27 = vector.broadcast %25 : vector<2x1xf32> to vector<2x32xf32>
    %28 = vector.broadcast %26 : vector<1x32xf32> to vector<2x32xf32>
    %29 = arith.mulf %27, %28 : vector<2x32xf32>
    %30 = arith.addf %18, %29 : vector<2x32xf32>
    %31 = vector.extract_strided_slice %3 {offsets = [1, 0], sizes = [1, 32], strides = [1, 1]} : vector<2x32xf32> to vector<1x32xf32>
    %32 = vector.broadcast %31 : vector<1x32xf32> to vector<2x32xf32>
    %33 = arith.mulf %17, %32 : vector<2x32xf32>
    %cst_11 = arith.constant dense<0.000000e+00> : vector<2xf32>
    %34 = vector.multi_reduction <add>, %33, %cst_11 [1] : vector<2x32xf32> to vector<2xf32>
    %35 = vector.shape_cast %34 : vector<2xf32> to vector<2x1xf32>
    %cst_12 = arith.constant 0.000000e+00 : f32
    %36 = vector.broadcast %cst_12 : f32 to vector<2x1xf32>
    %37 = arith.maximumf %35, %36 : vector<2x1xf32>
    %38 = vector.extract_strided_slice %4 {offsets = [1, 0], sizes = [1, 32], strides = [1, 1]} : vector<2x32xf32> to vector<1x32xf32>
    %39 = vector.broadcast %37 : vector<2x1xf32> to vector<2x32xf32>
    %40 = vector.broadcast %38 : vector<1x32xf32> to vector<2x32xf32>
    %41 = arith.mulf %39, %40 : vector<2x32xf32>
    %42 = arith.addf %30, %41 : vector<2x32xf32>
    %cst_13 = arith.constant 0.000000e+00 : f32
    %43 = vector.broadcast %cst_13 : f32 to vector<2x32xf32>
    %44 = arith.subf %43, %42 : vector<2x32xf32>
    %45 = math.exp %44 : vector<2x32xf32>
    %cst_14 = arith.constant 1.000000e+00 : f32
    %46 = vector.broadcast %cst_14 : f32 to vector<2x32xf32>
    %47 = arith.addf %46, %45 : vector<2x32xf32>
    %cst_15 = arith.constant 1.000000e+00 : f32
    %48 = vector.broadcast %cst_15 : f32 to vector<2x32xf32>
    %49 = arith.divf %48, %47 : vector<2x32xf32>
    %50 = tpu.iota {dimensions = array<i32: 0>} : vector<32x512xi32>
    %51 = tpu.iota {dimensions = array<i32: 1>} : vector<32x512xi32>
    %c16_i32_16 = arith.constant 16 : i32
    %52 = vector.broadcast %c16_i32_16 : i32 to vector<32x512xi32>
    %53 = arith.muli %50, %52 : vector<32x512xi32>
    %54 = arith.cmpi sge, %51, %53 : vector<32x512xi32>
    %c16_i32_17 = arith.constant 16 : i32
    %55 = vector.broadcast %c16_i32_17 : i32 to vector<32x512xi32>
    %56 = arith.addi %53, %55 : vector<32x512xi32>
    %57 = arith.cmpi slt, %51, %56 : vector<32x512xi32>
    %58 = arith.andi %54, %57 : vector<32x512xi1>
    %cst_18 = arith.constant 1.000000e+00 : f32
    %cst_19 = arith.constant 0.000000e+00 : f32
    %59 = vector.broadcast %cst_18 : f32 to vector<32x512xf32>
    %60 = vector.broadcast %cst_19 : f32 to vector<32x512xf32>
    %61 = arith.select %58, %59, %60 : vector<32x512xi1>, vector<32x512xf32>
    %cst_20 = arith.constant dense<0.000000e+00> : vector<2x512xf32>
    %62 = tpu.matmul %49, %61, %cst_20 {dimension_numbers = #tpu.dot_dimension_numbers<[1], [0], [0], [1], [0, 0, 1, 1], [], []>} : vector<2x32xf32>, vector<32x512xf32>, vector<2x512xf32> -> vector<2x512xf32>
    %63 = arith.mulf %0, %62 : vector<2x512xf32>
    %c0_21 = arith.constant 0 : index
    %c0_22 = arith.constant 0 : index
    %64 = vector.load %arg5[%c0_21, %c0_22] : memref<2x512xf32, #tpu.memory_space<vmem>>, vector<2x512xf32>
    tpu.vector_store %arg5[%c0_21, %c0_22], %63 {strides = array<i32>} : memref<2x512xf32, #tpu.memory_space<vmem>>, vector<2x512xf32>,
    %65 = arith.mulf %1, %62 : vector<2x512xf32>
    %c0_23 = arith.constant 0 : index
    %c0_24 = arith.constant 0 : index
    %66 = vector.load %arg4[%c0_23, %c0_24] : memref<2x512xf32, #tpu.memory_space<vmem>>, vector<2x512xf32>
    tpu.vector_store %arg4[%c0_23, %c0_24], %65 {strides = array<i32>} : memref<2x512xf32, #tpu.memory_space<vmem>>, vector<2x512xf32>,
    return
  }
  func.func @transform_0(%arg0: i32) -> (i32, i32) {
    %c0_i32 = arith.constant 0 : i32
    %c0_i32_0 = arith.constant 0 : i32
    return %arg0, %c0_i32 : i32, i32
  }
  func.func @transform_1(%arg0: i32) -> (i32, i32) {
    %c0_i32 = arith.constant 0 : i32
    %c0_i32_0 = arith.constant 0 : i32
    return %arg0, %c0_i32 : i32, i32
  }
  func.func @transform_2(%arg0: i32) -> (i32, i32) {
    %c0_i32 = arith.constant 0 : i32
    %c0_i32_0 = arith.constant 0 : i32
    %c0_i32_1 = arith.constant 0 : i32
    return %c0_i32, %c0_i32_0 : i32, i32
  }
  func.func @transform_3(%arg0: i32) -> (i32, i32) {
    %c0_i32 = arith.constant 0 : i32
    %c0_i32_0 = arith.constant 0 : i32
    return %arg0, %c0_i32 : i32, i32
  }
  func.func @transform_4(%arg0: i32) -> (i32, i32) {
    %c0_i32 = arith.constant 0 : i32
    %c0_i32_0 = arith.constant 0 : i32
    return %arg0, %c0_i32 : i32, i32
  }
}

</mosaic_0001>

<llo_original>
// kernel: tpu_custom_call.1
$region0: #{tpu_custom_call.1}
  #allocation0 [shape = 'u32[]', space=smem, size = 0x4, offset = 0x4, fixed_abs, tag = 'smem constant byte address 0x4 - core index']
  #allocation1 [shape = 'u32[72,128]{1,0:T(1,128)}', space=vmem, size = 0x9000, scoped, tag = 'internal scratch']
  %s0 = inlined_call_operand.hbm [shape: f32[2,512], index: 0, kind: input, shape index: {}]
  %s1 = inlined_call_operand.hbm [shape: f32[2,512], index: 1, kind: input, shape index: {}]
  %s2 = inlined_call_operand.hbm [shape: f32[4,32], index: 2, kind: input, shape index: {}]
  %s3 = inlined_call_operand.hbm [shape: f32[2,512], index: 3, kind: output, shape index: {0}]
  %s4 = inlined_call_operand.hbm [shape: f32[2,512], index: 4, kind: output, shape index: {1}]
  %5 = xla_tuple %s3, %s4
  %s6 = sld [smem:[#allocation0]]
  $region42: #{tpu_custom_call.1} parent=0
    _
  %s8 = ssub.s32 1, %s6
  %s9 = scalar_select 0, %s8, %s6
  $region1: #{tpu_custom_call.1} parent=0
    #allocation2 [shape = 'u8[4096]{0}', space=vmem, size = 0x1000, scoped, tag = 'input window, operand 0, single buffered']
    #allocation3 [shape = 's32[1]{0}', space=sflag, size = 0x4, scoped, tag = 'scoped memory for tpu_custom_call.1']
    #allocation4 [shape = 's32[1]{0}', space=sflag, size = 0x4, scoped, tag = 'scoped memory for tpu_custom_call.1']
    #allocation5 [shape = 'u8[4096]{0}', space=vmem, size = 0x1000, scoped, tag = 'input window, operand 1, single buffered']
    #allocation6 [shape = 's32[1]{0}', space=sflag, size = 0x4, scoped, tag = 'scoped memory for tpu_custom_call.1']
    #allocation7 [shape = 'u8[2048]{0}', space=vmem, size = 0x800, scoped, tag = 'input window, operand 2, single buffered']
    #allocation8 [shape = 'u8[4096]{0}', space=vmem, size = 0x1000, scoped, tag = 'output window, operand 0, single buffered']
    #allocation9 [shape = 'u8[4096]{0}', space=vmem, size = 0x1000, scoped, tag = 'output window, operand 1, single buffered']
    #allocation10 [shape = 's32[1]{0}', space=sflag, size = 0x4, scoped, tag = 'scoped memory for tpu_custom_call.1']
    %10 = vsyncpa [#allocation3], 0
    %11 = vsyncpa [#allocation6], 0
    %12 = vsyncpa [#allocation4], 0
    %13 = vsyncpa [#allocation10], 0
    // Predicated region
    $region2: #{tpu_custom_call.1} parent=1 // pred_check
      _
    $region3: #{tpu_custom_call.1} parent=1 // pred_check_branch
      %15 = sbr.rel (0) target = $region5
    $region4: #{tpu_custom_call.1} parent=1 // pred_region
      %17 = vsyncadd [#allocation3], 0
      %s19 = sshll.u32 %s0, 4
      %s20 = int_to_ptr.hbm [resolvable:$true] %s19
      %s21 = sshll.u32 [#allocation2], 4
      %s22 = int_to_ptr.vmem [resolvable:$true] %s21
      %24 = dma.hbm_to_vmem [thread:$0]  %s20, 128, %s22, [#allocation3]
    $region5: #{tpu_custom_call.1} parent=1 // pred_fallthru
      _
    // Predicated region
    $region6: #{tpu_custom_call.1} parent=1 // pred_check
      _
    $region7: #{tpu_custom_call.1} parent=1 // pred_check_branch
      %26 = sbr.rel (0) target = $region9
    $region8: #{tpu_custom_call.1} parent=1 // pred_region
      %28 = vsyncadd [#allocation6], 0
      %s30 = sshll.u32 %s1, 4
      %s31 = int_to_ptr.hbm [resolvable:$true] %s30
      %s32 = sshll.u32 [#allocation5], 4
      %s33 = int_to_ptr.vmem [resolvable:$true] %s32
      %35 = dma.hbm_to_vmem [thread:$0]  %s31, 128, %s33, [#allocation6]
    $region9: #{tpu_custom_call.1} parent=1 // pred_fallthru
      _
    // Predicated region
    $region10: #{tpu_custom_call.1} parent=1 // pred_check
      _
    $region11: #{tpu_custom_call.1} parent=1 // pred_check_branch
      %37 = sbr.rel (0) target = $region13
    $region12: #{tpu_custom_call.1} parent=1 // pred_region
      %39 = vsyncadd [#allocation6], 0
      %s41 = sshll.u32 %s2, 4
      %s42 = int_to_ptr.hbm [resolvable:$true] %s41
      %s43 = sshll.u32 [#allocation7], 4
      %s44 = int_to_ptr.vmem [resolvable:$true] %s43
      %46 = dma.hbm_to_vmem [thread:$0]  %s42, 64, %s44, [#allocation6]
    $region13: #{tpu_custom_call.1} parent=1 // pred_fallthru
      _
    // Predicated region
    $region14: #{tpu_custom_call.1} parent=1 // pred_check
      _
    $region15: #{tpu_custom_call.1} parent=1 // pred_check_branch
      %48 = sbr.rel (0) target = $region17
    $region16: #{tpu_custom_call.1} parent=1 // pred_region
      %50 = dma.done [#allocation3], 128
    $region17: #{tpu_custom_call.1} parent=1 // pred_fallthru
      _
    // Predicated region
    $region18: #{tpu_custom_call.1} parent=1 // pred_check
      _
    $region19: #{tpu_custom_call.1} parent=1 // pred_check_branch
      %52 = sbr.rel (0) target = $region21
    $region20: #{tpu_custom_call.1} parent=1 // pred_region
      %54 = dma.done [#allocation6], 128
    $region21: #{tpu_custom_call.1} parent=1 // pred_fallthru
      _
    // Predicated region
    $region22: #{tpu_custom_call.1} parent=1 // pred_check
      _
    $region23: #{tpu_custom_call.1} parent=1 // pred_check_branch
      %56 = sbr.rel (0) target = $region25
    $region24: #{tpu_custom_call.1} parent=1 // pred_region
      %58 = dma.done [#allocation6], 64
    $region25: #{tpu_custom_call.1} parent=1 // pred_fallthru
      _
    %v59 = vld [vmem:[#allocation2] sm:$0xff]
    %v60 = vld [vmem:[#allocation5] sm:$0xff]
    %v61 = vld [vmem:[#allocation7] sm:$0xf]
    %v62 = vlaneseq
    %v63 = vand.u32 %v62, 127
    %v64 = vlaneseq
    %v65 = vshrl.u32 %v64, 7
    %v66 = vadd.s32 %v65, 8
    %v67 = vadd.s32 %v65, 16
    %v68 = vadd.s32 %v65, 24
    %v69 = vadd.s32 %v65, 32
    %v70 = vadd.s32 %v65, 40
    %v71 = vadd.s32 %v65, 48
    %v72 = vadd.s32 %v65, 56
    %v73 = vadd.s32 %v65, 64
    %v74 = vadd.s32 %v65, 72
    %v75 = vadd.s32 %v65, 80
    %v76 = vadd.s32 %v65, 88
    %v77 = vadd.s32 %v65, 96
    %v78 = vadd.s32 %v65, 104
    %v79 = vadd.s32 %v65, 112
    %v80 = vadd.s32 %v65, 120
    %v81 = vadd.s32 %v65, 128
    %v82 = vadd.s32 %v65, 136
    %v83 = vadd.s32 %v65, 144
    %v84 = vadd.s32 %v65, 152
    %v85 = vadd.s32 %v65, 160
    %v86 = vadd.s32 %v65, 168
    %v87 = vadd.s32 %v65, 176
    %v88 = vadd.s32 %v65, 184
    %v89 = vadd.s32 %v65, 192
    %v90 = vadd.s32 %v65, 200
    %v91 = vadd.s32 %v65, 208
    %v92 = vadd.s32 %v65, 216
    %v93 = vadd.s32 %v65, 224
    %v94 = vadd.s32 %v65, 232
    %v95 = vadd.s32 %v65, 240
    %v96 = vadd.s32 %v65, 248
    %v97 = vadd.s32 %v65, 256
    %v98 = vadd.s32 %v65, 264
    %v99 = vadd.s32 %v65, 272
    %v100 = vadd.s32 %v65, 280
    %v101 = vadd.s32 %v65, 288
    %v102 = vadd.s32 %v65, 296
    %v103 = vadd.s32 %v65, 304
    %v104 = vadd.s32 %v65, 312
    %v105 = vadd.s32 %v65, 320
    %v106 = vadd.s32 %v65, 328
    %v107 = vadd.s32 %v65, 336
    %v108 = vadd.s32 %v65, 344
    %v109 = vadd.s32 %v65, 352
    %v110 = vadd.s32 %v65, 360
    %v111 = vadd.s32 %v65, 368
    %v112 = vadd.s32 %v65, 376
    %v113 = vadd.s32 %v65, 384
    %v114 = vadd.s32 %v65, 392
    %v115 = vadd.s32 %v65, 400
    %v116 = vadd.s32 %v65, 408
    %v117 = vadd.s32 %v65, 416
    %v118 = vadd.s32 %v65, 424
    %v119 = vadd.s32 %v65, 432
    %v120 = vadd.s32 %v65, 440
    %v121 = vadd.s32 %v65, 448
    %v122 = vadd.s32 %v65, 456
    %v123 = vadd.s32 %v65, 464
    %v124 = vadd.s32 %v65, 472
    %v125 = vadd.s32 %v65, 480
    %v126 = vadd.s32 %v65, 488
    %v127 = vadd.s32 %v65, 496
    %v128 = vadd.s32 %v65, 504
    %v129 = vmul.u32 %v63, 16
    %vm130 = vcmp.ge.s32.totalorder %v65, %v129
    %vm131 = vcmp.ge.s32.totalorder %v66, %v129
    %vm132 = vcmp.ge.s32.totalorder %v67, %v129
    %vm133 = vcmp.ge.s32.totalorder %v68, %v129
    %vm134 = vcmp.ge.s32.totalorder %v69, %v129
    %vm135 = vcmp.ge.s32.totalorder %v70, %v129
    %vm136 = vcmp.ge.s32.totalorder %v71, %v129
    %vm137 = vcmp.ge.s32.totalorder %v72, %v129
    %vm138 = vcmp.ge.s32.totalorder %v73, %v129
    %vm139 = vcmp.ge.s32.totalorder %v74, %v129
    %vm140 = vcmp.ge.s32.totalorder %v75, %v129
    %vm141 = vcmp.ge.s32.totalorder %v76, %v129
    %vm142 = vcmp.ge.s32.totalorder %v77, %v129
    %vm143 = vcmp.ge.s32.totalorder %v78, %v129
    %vm144 = vcmp.ge.s32.totalorder %v79, %v129
    %vm145 = vcmp.ge.s32.totalorder %v80, %v129
    %vm146 = vcmp.ge.s32.totalorder %v81, %v129
    %vm147 = vcmp.ge.s32.totalorder %v82, %v129
    %vm148 = vcmp.ge.s32.totalorder %v83, %v129
    %vm149 = vcmp.ge.s32.totalorder %v84, %v129
    %vm150 = vcmp.ge.s32.totalorder %v85, %v129
    %vm151 = vcmp.ge.s32.totalorder %v86, %v129
    %vm152 = vcmp.ge.s32.totalorder %v87, %v129
    %vm153 = vcmp.ge.s32.totalorder %v88, %v129
    %vm154 = vcmp.ge.s32.totalorder %v89, %v129
    %vm155 = vcmp.ge.s32.totalorder %v90, %v129
    %vm156 = vcmp.ge.s32.totalorder %v91, %v129
    %vm157 = vcmp.ge.s32.totalorder %v92, %v129
    %vm158 = vcmp.ge.s32.totalorder %v93, %v129
    %vm159 = vcmp.ge.s32.totalorder %v94, %v129
    %vm160 = vcmp.ge.s32.totalorder %v95, %v129
    %vm161 = vcmp.ge.s32.totalorder %v96, %v129
    %vm162 = vcmp.ge.s32.totalorder %v97, %v129
    %vm163 = vcmp.ge.s32.totalorder %v98, %v129
    %vm164 = vcmp.ge.s32.totalorder %v99, %v129
    %vm165 = vcmp.ge.s32.totalorder %v100, %v129
    %vm166 = vcmp.ge.s32.totalorder %v101, %v129
    %vm167 = vcmp.ge.s32.totalorder %v102, %v129
    %vm168 = vcmp.ge.s32.totalorder %v103, %v129
    %vm169 = vcmp.ge.s32.totalorder %v104, %v129
    %vm170 = vcmp.ge.s32.totalorder %v105, %v129
    %vm171 = vcmp.ge.s32.totalorder %v106, %v129
    %vm172 = vcmp.ge.s32.totalorder %v107, %v129
    %vm173 = vcmp.ge.s32.totalorder %v108, %v129
    %vm174 = vcmp.ge.s32.totalorder %v109, %v129
    %vm175 = vcmp.ge.s32.totalorder %v110, %v129
    %vm176 = vcmp.ge.s32.totalorder %v111, %v129
    %vm177 = vcmp.ge.s32.totalorder %v112, %v129
    %vm178 = vcmp.ge.s32.totalorder %v113, %v129
    %vm179 = vcmp.ge.s32.totalorder %v114, %v129
    %vm180 = vcmp.ge.s32.totalorder %v115, %v129
    %vm181 = vcmp.ge.s32.totalorder %v116, %v129
    %vm182 = vcmp.ge.s32.totalorder %v117, %v129
    %vm183 = vcmp.ge.s32.totalorder %v118, %v129
    %vm184 = vcmp.ge.s32.totalorder %v119, %v129
    %vm185 = vcmp.ge.s32.totalorder %v120, %v129
    %vm186 = vcmp.ge.s32.totalorder %v121, %v129
    %vm187 = vcmp.ge.s32.totalorder %v122, %v129
    %vm188 = vcmp.ge.s32.totalorder %v123, %v129
    %vm189 = vcmp.ge.s32.totalorder %v124, %v129
    %vm190 = vcmp.ge.s32.totalorder %v125, %v129
    %vm191 = vcmp.ge.s32.totalorder %v126, %v129
    %vm192 = vcmp.ge.s32.totalorder %v127, %v129
    %vm193 = vcmp.ge.s32.totalorder %v128, %v129
    %v194 = vadd.s32 %v129, 16
    %vm195 = vcmp.lt.s32.totalorder %v65, %v194
    %vm196 = vcmp.lt.s32.totalorder %v66, %v194
    %vm197 = vcmp.lt.s32.totalorder %v67, %v194
    %vm198 = vcmp.lt.s32.totalorder %v68, %v194
    %vm199 = vcmp.lt.s32.totalorder %v69, %v194
    %vm200 = vcmp.lt.s32.totalorder %v70, %v194
    %vm201 = vcmp.lt.s32.totalorder %v71, %v194
    %vm202 = vcmp.lt.s32.totalorder %v72, %v194
    %vm203 = vcmp.lt.s32.totalorder %v73, %v194
    %vm204 = vcmp.lt.s32.totalorder %v74, %v194
    %vm205 = vcmp.lt.s32.totalorder %v75, %v194
    %vm206 = vcmp.lt.s32.totalorder %v76, %v194
    %vm207 = vcmp.lt.s32.totalorder %v77, %v194
    %vm208 = vcmp.lt.s32.totalorder %v78, %v194
    %vm209 = vcmp.lt.s32.totalorder %v79, %v194
    %vm210 = vcmp.lt.s32.totalorder %v80, %v194
    %vm211 = vcmp.lt.s32.totalorder %v81, %v194
    %vm212 = vcmp.lt.s32.totalorder %v82, %v194
    %vm213 = vcmp.lt.s32.totalorder %v83, %v194
    %vm214 = vcmp.lt.s32.totalorder %v84, %v194
    %vm215 = vcmp.lt.s32.totalorder %v85, %v194
    %vm216 = vcmp.lt.s32.totalorder %v86, %v194
    %vm217 = vcmp.lt.s32.totalorder %v87, %v194
    %vm218 = vcmp.lt.s32.totalorder %v88, %v194
    %vm219 = vcmp.lt.s32.totalorder %v89, %v194
    %vm220 = vcmp.lt.s32.totalorder %v90, %v194
    %vm221 = vcmp.lt.s32.totalorder %v91, %v194
    %vm222 = vcmp.lt.s32.totalorder %v92, %v194
    %vm223 = vcmp.lt.s32.totalorder %v93, %v194
    %vm224 = vcmp.lt.s32.totalorder %v94, %v194
    %vm225 = vcmp.lt.s32.totalorder %v95, %v194
    %vm226 = vcmp.lt.s32.totalorder %v96, %v194
    %vm227 = vcmp.lt.s32.totalorder %v97, %v194
    %vm228 = vcmp.lt.s32.totalorder %v98, %v194
    %vm229 = vcmp.lt.s32.totalorder %v99, %v194
    %vm230 = vcmp.lt.s32.totalorder %v100, %v194
    %vm231 = vcmp.lt.s32.totalorder %v101, %v194
    %vm232 = vcmp.lt.s32.totalorder %v102, %v194
    %vm233 = vcmp.lt.s32.totalorder %v103, %v194
    %vm234 = vcmp.lt.s32.totalorder %v104, %v194
    %vm235 = vcmp.lt.s32.totalorder %v105, %v194
    %vm236 = vcmp.lt.s32.totalorder %v106, %v194
    %vm237 = vcmp.lt.s32.totalorder %v107, %v194
    %vm238 = vcmp.lt.s32.totalorder %v108, %v194
    %vm239 = vcmp.lt.s32.totalorder %v109, %v194
    %vm240 = vcmp.lt.s32.totalorder %v110, %v194
    %vm241 = vcmp.lt.s32.totalorder %v111, %v194
    %vm242 = vcmp.lt.s32.totalorder %v112, %v194
    %vm243 = vcmp.lt.s32.totalorder %v113, %v194
    %vm244 = vcmp.lt.s32.totalorder %v114, %v194
    %vm245 = vcmp.lt.s32.totalorder %v115, %v194
    %vm246 = vcmp.lt.s32.totalorder %v116, %v194
    %vm247 = vcmp.lt.s32.totalorder %v117, %v194
    %vm248 = vcmp.lt.s32.totalorder %v118, %v194
    %vm249 = vcmp.lt.s32.totalorder %v119, %v194
    %vm250 = vcmp.lt.s32.totalorder %v120, %v194
    %vm251 = vcmp.lt.s32.totalorder %v121, %v194
    %vm252 = vcmp.lt.s32.totalorder %v122, %v194
    %vm253 = vcmp.lt.s32.totalorder %v123, %v194
    %vm254 = vcmp.lt.s32.totalorder %v124, %v194
    %vm255 = vcmp.lt.s32.totalorder %v125, %v194
    %vm256 = vcmp.lt.s32.totalorder %v126, %v194
    %vm257 = vcmp.lt.s32.totalorder %v127, %v194
    %vm258 = vcmp.lt.s32.totalorder %v128, %v194
    %vm259 = vmand %vm130, %vm195
    %vm260 = vmand %vm131, %vm196
    %vm261 = vmand %vm132, %vm197
    %vm262 = vmand %vm133, %vm198
    %vm263 = vmand %vm134, %vm199
    %vm264 = vmand %vm135, %vm200
    %vm265 = vmand %vm136, %vm201
    %vm266 = vmand %vm137, %vm202
    %vm267 = vmand %vm138, %vm203
    %vm268 = vmand %vm139, %vm204
    %vm269 = vmand %vm140, %vm205
    %vm270 = vmand %vm141, %vm206
    %vm271 = vmand %vm142, %vm207
    %vm272 = vmand %vm143, %vm208
    %vm273 = vmand %vm144, %vm209
    %vm274 = vmand %vm145, %vm210
    %vm275 = vmand %vm146, %vm211
    %vm276 = vmand %vm147, %vm212
    %vm277 = vmand %vm148, %vm213
    %vm278 = vmand %vm149, %vm214
    %vm279 = vmand %vm150, %vm215
    %vm280 = vmand %vm151, %vm216
    %vm281 = vmand %vm152, %vm217
    %vm282 = vmand %vm153, %vm218
    %vm283 = vmand %vm154, %vm219
    %vm284 = vmand %vm155, %vm220
    %vm285 = vmand %vm156, %vm221
    %vm286 = vmand %vm157, %vm222
    %vm287 = vmand %vm158, %vm223
    %vm288 = vmand %vm159, %vm224
    %vm289 = vmand %vm160, %vm225
    %vm290 = vmand %vm161, %vm226
    %vm291 = vmand %vm162, %vm227
    %vm292 = vmand %vm163, %vm228
    %vm293 = vmand %vm164, %vm229
    %vm294 = vmand %vm165, %vm230
    %vm295 = vmand %vm166, %vm231
    %vm296 = vmand %vm167, %vm232
    %vm297 = vmand %vm168, %vm233
    %vm298 = vmand %vm169, %vm234
    %vm299 = vmand %vm170, %vm235
    %vm300 = vmand %vm171, %vm236
    %vm301 = vmand %vm172, %vm237
    %vm302 = vmand %vm173, %vm238
    %vm303 = vmand %vm174, %vm239
    %vm304 = vmand %vm175, %vm240
    %vm305 = vmand %vm176, %vm241
    %vm306 = vmand %vm177, %vm242
    %vm307 = vmand %vm178, %vm243
    %vm308 = vmand %vm179, %vm244
    %vm309 = vmand %vm180, %vm245
    %vm310 = vmand %vm181, %vm246
    %vm311 = vmand %vm182, %vm247
    %vm312 = vmand %vm183, %vm248
    %vm313 = vmand %vm184, %vm249
    %vm314 = vmand %vm185, %vm250
    %vm315 = vmand %vm186, %vm251
    %vm316 = vmand %vm187, %vm252
    %vm317 = vmand %vm188, %vm253
    %vm318 = vmand %vm189, %vm254
    %vm319 = vmand %vm190, %vm255
    %vm320 = vmand %vm191, %vm256
    %vm321 = vmand %vm192, %vm257
    %vm322 = vmand %vm193, %vm258
    %v323 = vsel %vm259, 0.0625, 0.0
    %v324 = vsel %vm260, 0.0625, 0.0
    %v325 = vsel %vm261, 0.0625, 0.0
    %v326 = vsel %vm262, 0.0625, 0.0
    %v327 = vsel %vm263, 0.0625, 0.0
    %v328 = vsel %vm264, 0.0625, 0.0
    %v329 = vsel %vm265, 0.0625, 0.0
    %v330 = vsel %vm266, 0.0625, 0.0
    %v331 = vsel %vm267, 0.0625, 0.0
    %v332 = vsel %vm268, 0.0625, 0.0
    %v333 = vsel %vm269, 0.0625, 0.0
    %v334 = vsel %vm270, 0.0625, 0.0
    %v335 = vsel %vm271, 0.0625, 0.0
    %v336 = vsel %vm272, 0.0625, 0.0
    %v337 = vsel %vm273, 0.0625, 0.0
    %v338 = vsel %vm274, 0.0625, 0.0
    %v339 = vsel %vm275, 0.0625, 0.0
    %v340 = vsel %vm276, 0.0625, 0.0
    %v341 = vsel %vm277, 0.0625, 0.0
    %v342 = vsel %vm278, 0.0625, 0.0
    %v343 = vsel %vm279, 0.0625, 0.0
    %v344 = vsel %vm280, 0.0625, 0.0
    %v345 = vsel %vm281, 0.0625, 0.0
    %v346 = vsel %vm282, 0.0625, 0.0
    %v347 = vsel %vm283, 0.0625, 0.0
    %v348 = vsel %vm284, 0.0625, 0.0
    %v349 = vsel %vm285, 0.0625, 0.0
    %v350 = vsel %vm286, 0.0625, 0.0
    %v351 = vsel %vm287, 0.0625, 0.0
    %v352 = vsel %vm288, 0.0625, 0.0
    %v353 = vsel %vm289, 0.0625, 0.0
    %v354 = vsel %vm290, 0.0625, 0.0
    %v355 = vsel %vm291, 0.0625, 0.0
    %v356 = vsel %vm292, 0.0625, 0.0
    %v357 = vsel %vm293, 0.0625, 0.0
    %v358 = vsel %vm294, 0.0625, 0.0
    %v359 = vsel %vm295, 0.0625, 0.0
    %v360 = vsel %vm296, 0.0625, 0.0
    %v361 = vsel %vm297, 0.0625, 0.0
    %v362 = vsel %vm298, 0.0625, 0.0
    %v363 = vsel %vm299, 0.0625, 0.0
    %v364 = vsel %vm300, 0.0625, 0.0
    %v365 = vsel %vm301, 0.0625, 0.0
    %v366 = vsel %vm302, 0.0625, 0.0
    %v367 = vsel %vm303, 0.0625, 0.0
    %v368 = vsel %vm304, 0.0625, 0.0
    %v369 = vsel %vm305, 0.0625, 0.0
    %v370 = vsel %vm306, 0.0625, 0.0
    %v371 = vsel %vm307, 0.0625, 0.0
    %v372 = vsel %vm308, 0.0625, 0.0
    %v373 = vsel %vm309, 0.0625, 0.0
    %v374 = vsel %vm310, 0.0625, 0.0
    %v375 = vsel %vm311, 0.0625, 0.0
    %v376 = vsel %vm312, 0.0625, 0.0
    %v377 = vsel %vm313, 0.0625, 0.0
    %v378 = vsel %vm314, 0.0625, 0.0
    %v379 = vsel %vm315, 0.0625, 0.0
    %v380 = vsel %vm316, 0.0625, 0.0
    %v381 = vsel %vm317, 0.0625, 0.0
    %v382 = vsel %vm318, 0.0625, 0.0
    %v383 = vsel %vm319, 0.0625, 0.0
    %v384 = vsel %vm320, 0.0625, 0.0
    %v385 = vsel %vm321, 0.0625, 0.0
    %v386 = vsel %vm322, 0.0625, 0.0
    %388 = vst [vmem:[#allocation1] ss:$4 sm:$0xff] %v59
    %v389 = vld.sshfl [vmem:[#allocation1] sm:$0xff pattern:$0x73625140]
    %v390 = vld.sshfl [vmem:[#allocation1 + $0x8] sm:$0xff pattern:$0x73625140]
    %v391 = vld.sshfl [vmem:[#allocation1 + $0x10] sm:$0xff pattern:$0x73625140]
    %v392 = vld.sshfl [vmem:[#allocation1 + $0x18] sm:$0xff pattern:$0x73625140]
    %397 = vmatpush.msra.mxu0 %v338
    %398 = vmatpush.msra.mxu0 %v337
    %399 = vmatpush.msra.mxu0 %v336
    %400 = vmatpush.msra.mxu0 %v335
    %401 = vmatpush.msra.mxu0 %v334
    %402 = vmatpush.msra.mxu0 %v333
    %403 = vmatpush.msra.mxu0 %v332
    %404 = vmatpush.msra.mxu0 %v331
    %405 = vmatpush.msra.mxu0 %v330
    %406 = vmatpush.msra.mxu0 %v329
    %407 = vmatpush.msra.mxu0 %v328
    %408 = vmatpush.msra.mxu0 %v327
    %409 = vmatpush.msra.mxu0 %v326
    %410 = vmatpush.msra.mxu0 %v325
    %411 = vmatpush.msra.mxu0 %v324
    %412 = vmatpush.msra.mxu0 %v323
    %413 = vmatmul.f32.gmra.mxu0 %v389
    %v414 = vpop.f32.mrf.mxu0
    %v415 = vadd.f32 0.0, %v414
    %416 = vdwg.mxu0
    %417 = vmatpush.msra.mxu0 %v354
    %418 = vmatpush.msra.mxu0 %v353
    %419 = vmatpush.msra.mxu0 %v352
    %420 = vmatpush.msra.mxu0 %v351
    %421 = vmatpush.msra.mxu0 %v350
    %422 = vmatpush.msra.mxu0 %v349
    %423 = vmatpush.msra.mxu0 %v348
    %424 = vmatpush.msra.mxu0 %v347
    %425 = vmatpush.msra.mxu0 %v346
    %426 = vmatpush.msra.mxu0 %v345
    %427 = vmatpush.msra.mxu0 %v344
    %428 = vmatpush.msra.mxu0 %v343
    %429 = vmatpush.msra.mxu0 %v342
    %430 = vmatpush.msra.mxu0 %v341
    %431 = vmatpush.msra.mxu0 %v340
    %432 = vmatpush.msra.mxu0 %v339
    %433 = vmatmul.f32.gmra.mxu0 %v390
    %v434 = vpop.f32.mrf.mxu0
    %v435 = vadd.f32 %v415, %v434
    %436 = vdwg.mxu0
    %437 = vmatpush.msra.mxu0 %v370
    %438 = vmatpush.msra.mxu0 %v369
    %439 = vmatpush.msra.mxu0 %v368
    %440 = vmatpush.msra.mxu0 %v367
    %441 = vmatpush.msra.mxu0 %v366
    %442 = vmatpush.msra.mxu0 %v365
    %443 = vmatpush.msra.mxu0 %v364
    %444 = vmatpush.msra.mxu0 %v363
    %445 = vmatpush.msra.mxu0 %v362
    %446 = vmatpush.msra.mxu0 %v361
    %447 = vmatpush.msra.mxu0 %v360
    %448 = vmatpush.msra.mxu0 %v359
    %449 = vmatpush.msra.mxu0 %v358
    %450 = vmatpush.msra.mxu0 %v357
    %451 = vmatpush.msra.mxu0 %v356
    %452 = vmatpush.msra.mxu0 %v355
    %453 = vmatmul.f32.gmra.mxu0 %v391
    %v454 = vpop.f32.mrf.mxu0
    %v455 = vadd.f32 %v435, %v454
    %456 = vdwg.mxu0
    %457 = vmatpush.msra.mxu0 %v386
    %458 = vmatpush.msra.mxu0 %v385
    %459 = vmatpush.msra.mxu0 %v384
    %460 = vmatpush.msra.mxu0 %v383
    %461 = vmatpush.msra.mxu0 %v382
    %462 = vmatpush.msra.mxu0 %v381
    %463 = vmatpush.msra.mxu0 %v380
    %464 = vmatpush.msra.mxu0 %v379
    %465 = vmatpush.msra.mxu0 %v378
    %466 = vmatpush.msra.mxu0 %v377
    %467 = vmatpush.msra.mxu0 %v376
    %468 = vmatpush.msra.mxu0 %v375
    %469 = vmatpush.msra.mxu0 %v374
    %470 = vmatpush.msra.mxu0 %v373
    %471 = vmatpush.msra.mxu0 %v372
    %472 = vmatpush.msra.mxu0 %v371
    %473 = vmatmul.f32.gmra.mxu0 %v392
    %v474 = vpop.f32.mrf.mxu0
    %v475 = vadd.f32 %v455, %v474
    %476 = vdwg.mxu0
    %v477 = vperm.slane %v61, 0
    %v478 = vmul.f32 %v475, %v477
    %vm479 = vcmask 254976
    %v480 = vsel %vm479, %v478, 0.0
    %481 = vadd.xlane.f32.xlu0 %v480
    %v482 = vpop.xlane.xlu0 %481
    %v483 = vmax.f32 %v482, 0.0
    %v484 = vperm.slane %v61, 2
    %v485 = vmul.f32 %v483, %v484
    %v486 = vadd.f32 %v485, 0.0
    %v487 = vperm.slane %v61, 1
    %v488 = vmul.f32 %v475, %v487
    %v489 = vsel %vm479, %v488, 0.0
    %490 = vadd.xlane.f32.xlu0 %v489
    %v491 = vpop.xlane.xlu0 %490
    %v492 = vmax.f32 %v491, 0.0
    %v493 = vperm.slane %v61, 3
    %v494 = vmul.f32 %v492, %v493
    %v495 = vadd.f32 %v486, %v494
    %v496 = vsub.f32 0.0, %v495
    %v497 = vmul.f32 %v496, 1.442695
    %v498 = vpow.pop %v497
    %v499 = vadd.f32 %v498, 1.0
    %v500 = vrcp.pop %v499
    %v501 = vmul.f32 %v499, %v500
    %v502 = vsub.f32 1.0, %v501
    %v503 = vmul.f32 %v500, %v502
    %v504 = vadd.f32 %v500, %v503
    %vm505 = vweird.f32 %v499
    %vm506 = vweird.f32 %v500
    %vm507 = vmor %vm505, %vm506
    %v508 = vsel %vm507, %v500, %v504
    %v509 = vand.u32 2147483647, %v499
    %vm510 = vcmp.eq.f32.partialorder %v509, 8.507059e+37
    %v511 = vand.u32 %v499, 2147483648
    %v512 = vor.u32 1.1754944e-38, %v511
    %v513 = vsel %vm510, %v512, %v508
    %v514 = vmul.f32 1.0, %v513
    %v515 = vadd.s32 %v63, 128
    %v516 = vadd.s32 %v63, 256
    %v517 = vadd.s32 %v63, 384
    %v518 = vmul.u32 %v65, 16
    %v519 = vmul.u32 %v66, 16
    %v520 = vmul.u32 %v67, 16
    %v521 = vmul.u32 %v68, 16
    %vm522 = vcmp.ge.s32.totalorder %v63, %v518
    %vm523 = vcmp.ge.s32.totalorder %v515, %v518
    %vm524 = vcmp.ge.s32.totalorder %v516, %v518
    %vm525 = vcmp.ge.s32.totalorder %v517, %v518
    %vm526 = vcmp.ge.s32.totalorder %v63, %v519
    %vm527 = vcmp.ge.s32.totalorder %v515, %v519
    %vm528 = vcmp.ge.s32.totalorder %v516, %v519
    %vm529 = vcmp.ge.s32.totalorder %v517, %v519
    %vm530 = vcmp.ge.s32.totalorder %v63, %v520
    %vm531 = vcmp.ge.s32.totalorder %v515, %v520
    %vm532 = vcmp.ge.s32.totalorder %v516, %v520
    %vm533 = vcmp.ge.s32.totalorder %v517, %v520
    %vm534 = vcmp.ge.s32.totalorder %v63, %v521
    %vm535 = vcmp.ge.s32.totalorder %v515, %v521
    %vm536 = vcmp.ge.s32.totalorder %v516, %v521
    %vm537 = vcmp.ge.s32.totalorder %v517, %v521
    %v538 = vadd.s32 %v518, 16
    %v539 = vadd.s32 %v519, 16
    %v540 = vadd.s32 %v520, 16
    %v541 = vadd.s32 %v521, 16
    %vm542 = vcmp.lt.s32.totalorder %v63, %v538
    %vm543 = vcmp.lt.s32.totalorder %v515, %v538
    %vm544 = vcmp.lt.s32.totalorder %v516, %v538
    %vm545 = vcmp.lt.s32.totalorder %v517, %v538
    %vm546 = vcmp.lt.s32.totalorder %v63, %v539
    %vm547 = vcmp.lt.s32.totalorder %v515, %v539
    %vm548 = vcmp.lt.s32.totalorder %v516, %v539
    %vm549 = vcmp.lt.s32.totalorder %v517, %v539
    %vm550 = vcmp.lt.s32.totalorder %v63, %v540
    %vm551 = vcmp.lt.s32.totalorder %v515, %v540
    %vm552 = vcmp.lt.s32.totalorder %v516, %v540
    %vm553 = vcmp.lt.s32.totalorder %v517, %v540
    %vm554 = vcmp.lt.s32.totalorder %v63, %v541
    %vm555 = vcmp.lt.s32.totalorder %v515, %v541
    %vm556 = vcmp.lt.s32.totalorder %v516, %v541
    %vm557 = vcmp.lt.s32.totalorder %v517, %v541
    %vm558 = vmand %vm522, %vm542
    %vm559 = vmand %vm523, %vm543
    %vm560 = vmand %vm524, %vm544
    %vm561 = vmand %vm525, %vm545
    %vm562 = vmand %vm526, %vm546
    %vm563 = vmand %vm527, %vm547
    %vm564 = vmand %vm528, %vm548
    %vm565 = vmand %vm529, %vm549
    %vm566 = vmand %vm530, %vm550
    %vm567 = vmand %vm531, %vm551
    %vm568 = vmand %vm532, %vm552
    %vm569 = vmand %vm533, %vm553
    %vm570 = vmand %vm534, %vm554
    %vm571 = vmand %vm535, %vm555
    %vm572 = vmand %vm536, %vm556
    %vm573 = vmand %vm537, %vm557
    %v574 = vsel %vm558, 1.0, 0.0
    %v575 = vsel %vm559, 1.0, 0.0
    %v576 = vsel %vm560, 1.0, 0.0
    %v577 = vsel %vm561, 1.0, 0.0
    %v578 = vsel %vm562, 1.0, 0.0
    %v579 = vsel %vm563, 1.0, 0.0
    %v580 = vsel %vm564, 1.0, 0.0
    %v581 = vsel %vm565, 1.0, 0.0
    %v582 = vsel %vm566, 1.0, 0.0
    %v583 = vsel %vm567, 1.0, 0.0
    %v584 = vsel %vm568, 1.0, 0.0
    %v585 = vsel %vm569, 1.0, 0.0
    %v586 = vsel %vm570, 1.0, 0.0
    %v587 = vsel %vm571, 1.0, 0.0
    %v588 = vsel %vm572, 1.0, 0.0
    %v589 = vsel %vm573, 1.0, 0.0
    %vm590 = vcmask 261120
    %v592 = vsel %vm590, %v514, 0
    %594 = vmatpush.msra.mxu0 0.0
    %595 = vmatpush.msra.mxu0 0.0
    %596 = vmatpush.msra.mxu0 0.0
    %597 = vmatpush.msra.mxu0 0.0
    %598 = vmatpush.msra.mxu0 0.0
    %599 = vmatpush.msra.mxu0 0.0
    %600 = vmatpush.msra.mxu0 0.0
    %601 = vmatpush.msra.mxu0 0.0
    %602 = vmatpush.msra.mxu0 0.0
    %603 = vmatpush.msra.mxu0 0.0
    %604 = vmatpush.msra.mxu0 0.0
    %605 = vmatpush.msra.mxu0 0.0
    %606 = vmatpush.msra.mxu0 %v586
    %607 = vmatpush.msra.mxu0 %v582
    %608 = vmatpush.msra.mxu0 %v578
    %609 = vmatpush.msra.mxu0 %v574
    %610 = vmatmul.f32.gmra.mxu0 %v592
    %v611 = vpop.f32.mrf.mxu0
    %v612 = vadd.f32 0.0, %v611
    %613 = vdwg.mxu0
    %614 = vmatpush.msra.mxu0 0.0
    %615 = vmatpush.msra.mxu0 0.0
    %616 = vmatpush.msra.mxu0 0.0
    %617 = vmatpush.msra.mxu0 0.0
    %618 = vmatpush.msra.mxu0 0.0
    %619 = vmatpush.msra.mxu0 0.0
    %620 = vmatpush.msra.mxu0 0.0
    %621 = vmatpush.msra.mxu0 0.0
    %622 = vmatpush.msra.mxu0 0.0
    %623 = vmatpush.msra.mxu0 0.0
    %624 = vmatpush.msra.mxu0 0.0
    %625 = vmatpush.msra.mxu0 0.0
    %626 = vmatpush.msra.mxu0 %v587
    %627 = vmatpush.msra.mxu0 %v583
    %628 = vmatpush.msra.mxu0 %v579
    %629 = vmatpush.msra.mxu0 %v575
    %630 = vmatmul.f32.gmra.mxu0 %v592
    %v631 = vpop.f32.mrf.mxu0
    %v632 = vadd.f32 0.0, %v631
    %633 = vdwg.mxu0
    %634 = vmatpush.msra.mxu0 0.0
    %635 = vmatpush.msra.mxu0 0.0
    %636 = vmatpush.msra.mxu0 0.0
    %637 = vmatpush.msra.mxu0 0.0
    %638 = vmatpush.msra.mxu0 0.0
    %639 = vmatpush.msra.mxu0 0.0
    %640 = vmatpush.msra.mxu0 0.0
    %641 = vmatpush.msra.mxu0 0.0
    %642 = vmatpush.msra.mxu0 0.0
    %643 = vmatpush.msra.mxu0 0.0
    %644 = vmatpush.msra.mxu0 0.0
    %645 = vmatpush.msra.mxu0 0.0
    %646 = vmatpush.msra.mxu0 %v588
    %647 = vmatpush.msra.mxu0 %v584
    %648 = vmatpush.msra.mxu0 %v580
    %649 = vmatpush.msra.mxu0 %v576
    %650 = vmatmul.f32.gmra.mxu0 %v592
    %v651 = vpop.f32.mrf.mxu0
    %v652 = vadd.f32 0.0, %v651
    %653 = vdwg.mxu0
    %654 = vmatpush.msra.mxu0 0.0
    %655 = vmatpush.msra.mxu0 0.0
    %656 = vmatpush.msra.mxu0 0.0
    %657 = vmatpush.msra.mxu0 0.0
    %658 = vmatpush.msra.mxu0 0.0
    %659 = vmatpush.msra.mxu0 0.0
    %660 = vmatpush.msra.mxu0 0.0
    %661 = vmatpush.msra.mxu0 0.0
    %662 = vmatpush.msra.mxu0 0.0
    %663 = vmatpush.msra.mxu0 0.0
    %664 = vmatpush.msra.mxu0 0.0
    %665 = vmatpush.msra.mxu0 0.0
    %666 = vmatpush.msra.mxu0 %v589
    %667 = vmatpush.msra.mxu0 %v585
    %668 = vmatpush.msra.mxu0 %v581
    %669 = vmatpush.msra.mxu0 %v577
    %670 = vmatmul.f32.gmra.mxu0 %v592
    %v671 = vpop.f32.mrf.mxu0
    %v672 = vadd.f32 0.0, %v671
    %673 = vdwg.mxu0
    %v678 = vrot.slane %v632, 6
    %v679 = vrot.slane %v652, 4
    %v680 = vrot.slane %v672, 2
    %vm681 = vcmask 1041408
    %v682 = vsel %vm681, %v612, %v678
    %vm683 = vcmask 1045508
    %v684 = vsel %vm683, %v679, %v680
    %vm685 = vcmask 1043456
    %v686 = vsel %vm685, %v682, %v684
    %v688 = vmul.f32 %v59, %v686
    %689 = vst [vmem:[#allocation9] sm:$0xff] %v688
    %v690 = vmul.f32 %v60, %v686
    %691 = vst [vmem:[#allocation8] sm:$0xff] %v690
    // Predicated region
    $region26: #{tpu_custom_call.1} parent=1 // pred_check
      _
    $region27: #{tpu_custom_call.1} parent=1 // pred_check_branch
      %693 = sbr.rel (0) target = $region29
    $region28: #{tpu_custom_call.1} parent=1 // pred_region
      %695 = vsyncadd [#allocation4], 0
      %s697 = sshll.u32 [#allocation8], 4
      %s698 = int_to_ptr.vmem [resolvable:$true] %s697
      %s699 = sshll.u32 %s3, 4
      %s700 = int_to_ptr.hbm [resolvable:$true] %s699
      %702 = dma.vmem_to_hbm [thread:$0]  %s698, 128, %s700, [#allocation4]
    $region29: #{tpu_custom_call.1} parent=1 // pred_fallthru
      _
    // Predicated region
    $region30: #{tpu_custom_call.1} parent=1 // pred_check
      _
    $region31: #{tpu_custom_call.1} parent=1 // pred_check_branch
      %704 = sbr.rel (0) target = $region33
    $region32: #{tpu_custom_call.1} parent=1 // pred_region
      %706 = vsyncadd [#allocation10], 0
      %s708 = sshll.u32 [#allocation9], 4
      %s709 = int_to_ptr.vmem [resolvable:$true] %s708
      %s710 = sshll.u32 %s4, 4
      %s711 = int_to_ptr.hbm [resolvable:$true] %s710
      %713 = dma.vmem_to_hbm [thread:$0]  %s709, 128, %s711, [#allocation10]
    $region33: #{tpu_custom_call.1} parent=1 // pred_fallthru
      _
    // Predicated region
    $region34: #{tpu_custom_call.1} parent=1 // pred_check
      _
    $region35: #{tpu_custom_call.1} parent=1 // pred_check_branch
      %715 = sbr.rel (0) target = $region37
    $region36: #{tpu_custom_call.1} parent=1 // pred_region
      %717 = dma.done [#allocation4], 128
    $region37: #{tpu_custom_call.1} parent=1 // pred_fallthru
      _
    // Predicated region
    $region38: #{tpu_custom_call.1} parent=1 // pred_check
      _
    $region39: #{tpu_custom_call.1} parent=1 // pred_check_branch
      %719 = sbr.rel (0) target = $region41
    $region40: #{tpu_custom_call.1} parent=1 // pred_region
      %721 = dma.done [#allocation10], 128
    $region41: #{tpu_custom_call.1} parent=1 // pred_fallthru
      _
    %722 = vsyncpa [#allocation3], 1
    %723 = vsyncpa [#allocation6], 1
    %724 = vsyncpa [#allocation4], 1
    %725 = vsyncpa [#allocation10], 1

</llo_original>
